<compile_context>
chip_gen: v7x
topology: tpu7x:2x2x1
jax: 0.10.0
libtpu: 0.0.40
codegen_flags: <defaults>
</compile_context>

<pallas_src>
import jax
import jax.numpy as jnp
from jax.experimental import pallas as pl
from jax.experimental.pallas import tpu as pltpu

_LANE = 128
# ~2 MiB per block: double-buffered in + out = ~8 MiB in VMEM, fits every
# generation's default scoped VMEM limit with headroom (incl. v7x's 64 MiB TC).
_TARGET_BLOCK_BYTES = 2 * 1024 * 1024


def _identity_kernel(x_ref, o_ref):
    # Whole-tile load/store of one lane-dense block per grid step.
    o_ref[...] = x_ref[...]


def _sublane_multiple(dtype) -> int:
    # Sub-32-bit dtypes pack along sublanes (bf16 -> 16 rows/vreg, int8 -> 32);
    # keeping block rows a multiple of this avoids relayout copies in VMEM.
    bits = jnp.dtype(dtype).itemsize * 8
    return max(8, 256 // bits)


def _pick_block_rows(rows: int, sub: int, target_rows: int) -> int:
    """Largest sublane-multiple block of rows <= target, preferring an exact
    divisor of `rows` (no ragged tail) and >= 2 grid steps when possible."""
    if rows <= 2 * sub:
        return rows  # tiny input: single full-extent block is legal & cheapest
    # Cap at rows // 2 so the grid has >= 2 "parallel" steps (both v7x TCs).
    cap = min(target_rows, rows // 2)
    cap = max(sub, (cap // sub) * sub)
    # Prefer an exact divisor of rows so every step is identical (no vst.msk).
    for br in range(cap, sub - 1, -sub):
        if rows % br == 0:
            return br
    return cap  # no divisor found: ragged tail block is masked by Pallas


def _copy_2d(x2: jax.Array, *, donate: bool) -> jax.Array:
    """Blocked lane-dense identity copy of a (rows, 128) array."""
    rows, lanes = x2.shape
    itemsize = jnp.dtype(x2.dtype).itemsize
    sub = _sublane_multiple(x2.dtype)
    target_rows = max(sub, _TARGET_BLOCK_BYTES // (itemsize * lanes))
    block_rows = _pick_block_rows(rows, sub, target_rows)
    grid = (pl.cdiv(rows, block_rows),)

    cost = pl.CostEstimate(
        flops=0, transcendentals=0, bytes_accessed=2 * rows * lanes * itemsize
    )
    # Aliasing is only a win if the caller actually donates the buffer;
    # otherwise XLA inserts a defensive copy, so it is strictly opt-in.
    alias = {0: 0} if donate else {}

    return pl.pallas_call(
        _identity_kernel,
        out_shape=jax.ShapeDtypeStruct((rows, lanes), x2.dtype),
        grid_spec=pltpu.PrefetchScalarGridSpec(
            num_scalar_prefetch=0,
            grid=grid,
            in_specs=[pl.BlockSpec((block_rows, lanes), lambda i: (i, 0))],
            out_specs=pl.BlockSpec((block_rows, lanes), lambda i: (i, 0)),
        ),
        input_output_aliases=alias,
        cost_estimate=cost,
        compiler_params=pltpu.CompilerParams(
            dimension_semantics=("parallel",),  # shards row blocks over v7x's 2 TCs
        ),
    )(x2)


def base_decoder_forward(
    x: jax.Array, *, use_pallas_kernel: bool = False, donate_input: bool = False
) -> jax.Array:
    """BaseDecoder.forward (identity interface on an NCHW feature map).

    Default: a true no-op (`return x`) — zero HBM traffic, the fastest correct
    realization of the abstract forward.  Set `use_pallas_kernel=True` to run
    the explicit Pallas identity-copy kernel (plumbing/debug path); set
    `donate_input=True` only if the caller donates `x` (enables in-place alias).
    """
    if not use_pallas_kernel:
        return x

    total = x.size
    if total == 0:
        return x

    if total % _LANE == 0:
        # Lane-dense 2D view: row-major flatten is pure layout plumbing, so the
        # identity semantics (element order) are preserved exactly.
        rows = total // _LANE
        out2 = _copy_2d(x.reshape(rows, _LANE), donate=donate_input)
        return out2.reshape(x.shape)

    # Ragged element count: pad the flattened view to a lane multiple and reuse
    # the blocked 2D path (never stages the entire array as one VMEM block).
    padded_total = pl.cdiv(total, _LANE) * _LANE
    x1 = jnp.pad(x.reshape(-1), (0, padded_total - total))
    out2 = _copy_2d(x1.reshape(padded_total // _LANE, _LANE), donate=False)
    return out2.reshape(-1)[:total].reshape(x.shape)


if __name__ == "__main__":
    key = jax.random.PRNGKey(0)
    shape, dtype = (2, 4, 16, 16), jnp.float32  # small NCHW decoder input
    x = jax.random.normal(key, shape, dtype=dtype)

    # Default (recommended) path: identity no-op, zero HBM traffic.
    y_fast = base_decoder_forward(x)
    assert y_fast is x

    # Pallas kernel path (no donation, so x stays readable for the comparison).
    y = jax.block_until_ready(base_decoder_forward(x, use_pallas_kernel=True))
    assert y.shape == shape, (y.shape, shape)
    assert y.dtype == dtype, (y.dtype, dtype)
    assert bool(jnp.all(y == x)), "identity forward mismatch (aligned path)"

    # Ragged path (element count not a multiple of 128): padded blocked copy.
    xr = jax.random.normal(jax.random.PRNGKey(1), (2, 3, 5, 7), dtype=jnp.float32)
    yr = jax.block_until_ready(base_decoder_forward(xr, use_pallas_kernel=True))
    assert yr.shape == xr.shape and yr.dtype == xr.dtype
    assert bool(jnp.all(yr == xr)), "identity forward mismatch (ragged path)"

    print("KERNEL_OK")
</pallas_src>

<mosaic_0001>
module attributes {stable_mosaic.version = 11 : i64} {
  func.func @_identity_kernel(%arg0: i32, %arg1: memref<16x128xf32, #tpu.memory_space<vmem>>, %arg2: memref<16x128xf32, #tpu.memory_space<vmem>>) attributes {dimension_semantics = [#tpu.dimension_semantics<parallel>], iteration_bounds = array<i64: 1>, scalar_prefetch = 0 : i64, scratch_operands = 0 : i64, tpu.core_type = #tpu.core_type<tc>, window_params = [{transform_indices = @transform_0, window_bounds = array<i64: 16, 128>}, {transform_indices = @transform_1, window_bounds = array<i64: 16, 128>}]} {
    %c0 = arith.constant 0 : index
    %c0_0 = arith.constant 0 : index
    %0 = vector.load %arg1[%c0, %c0_0] : memref<16x128xf32, #tpu.memory_space<vmem>>, vector<16x128xf32>
    %c0_1 = arith.constant 0 : index
    %c0_2 = arith.constant 0 : index
    %1 = vector.load %arg2[%c0_1, %c0_2] : memref<16x128xf32, #tpu.memory_space<vmem>>, vector<16x128xf32>
    tpu.vector_store %arg2[%c0_1, %c0_2], %0 {strides = array<i32>} : memref<16x128xf32, #tpu.memory_space<vmem>>, vector<16x128xf32>,
    return
  }
  func.func @transform_0(%arg0: i32) -> (i32, i32) {
    %c0_i32 = arith.constant 0 : i32
    %c0_i32_0 = arith.constant 0 : i32
    return %arg0, %c0_i32 : i32, i32
  }
  func.func @transform_1(%arg0: i32) -> (i32, i32) {
    %c0_i32 = arith.constant 0 : i32
    %c0_i32_0 = arith.constant 0 : i32
    return %arg0, %c0_i32 : i32, i32
  }
}

</mosaic_0001>

<llo_original>
// kernel: tpu_custom_call.1
$region0: #{tpu_custom_call.1}
  #allocation0 [shape = 'u32[]', space=smem, size = 0x4, offset = 0x4, fixed_abs, tag = 'smem constant byte address 0x4 - core index']
  #allocation1 [shape = 'u32[144,128]{1,0:T(1,128)}', space=vmem, size = 0x12000, scoped, tag = 'internal scratch']
  %s0 = inlined_call_operand.hbm [shape: f32[16,128], index: 0, kind: input, shape index: {}]
  %s1 = inlined_call_operand.hbm [shape: f32[16,128], index: 1, kind: output, shape index: {}]
  %s2 = sld [smem:[#allocation0]]
  $region18: #{tpu_custom_call.1} parent=0
    _
  %s4 = ssub.s32 1, %s2
  %s5 = scalar_select 0, %s4, %s2
  $region1: #{tpu_custom_call.1} parent=0
    #allocation2 [shape = 'u8[8192]{0}', space=vmem, size = 0x2000, scoped, tag = 'input window, operand 0, single buffered']
    #allocation3 [shape = 's32[1]{0}', space=sflag, size = 0x4, scoped, tag = 'scoped memory for tpu_custom_call.1']
    #allocation4 [shape = 's32[1]{0}', space=sflag, size = 0x4, scoped, tag = 'scoped memory for tpu_custom_call.1']
    #allocation5 [shape = 'u8[8192]{0}', space=vmem, size = 0x2000, scoped, tag = 'output window, operand 0, single buffered']
    %6 = vsyncpa [#allocation3], 0
    %7 = vsyncpa [#allocation4], 0
    // Predicated region
    $region2: #{tpu_custom_call.1} parent=1 // pred_check
      _
    $region3: #{tpu_custom_call.1} parent=1 // pred_check_branch
      %9 = sbr.rel (0) target = $region5
    $region4: #{tpu_custom_call.1} parent=1 // pred_region
      %s11 = ssub.s32 256, 256
      %12 = vsyncadd [#allocation3], %s11
      %s13 = sshll.u32 [#allocation2], 4
      %s14 = int_to_ptr.vmem [resolvable:$true] %s13
      %19 = dma.hbm_to_vmem [thread:$0]  %s0, 256, %s14, [#allocation3], 128, 128, 8
    $region5: #{tpu_custom_call.1} parent=1 // pred_fallthru
      _
    // Predicated region
    $region6: #{tpu_custom_call.1} parent=1 // pred_check
      _
    $region7: #{tpu_custom_call.1} parent=1 // pred_check_branch
      %21 = sbr.rel (0) target = $region9
    $region8: #{tpu_custom_call.1} parent=1 // pred_region
      %22 = dma.done [#allocation3], 256
    $region9: #{tpu_custom_call.1} parent=1 // pred_fallthru
      _
    %v23 = vld [vmem:[#allocation2] sm:$0xff]
    %v24 = vld [vmem:[#allocation2 + $0x8] sm:$0xff]
    %25 = vst [vmem:[#allocation5] sm:$0xff] %v23
    %26 = vst [vmem:[#allocation5 + $0x8] sm:$0xff] %v24
    // Predicated region
    $region10: #{tpu_custom_call.1} parent=1 // pred_check
      _
    $region11: #{tpu_custom_call.1} parent=1 // pred_check_branch
      %28 = sbr.rel (0) target = $region13
    $region12: #{tpu_custom_call.1} parent=1 // pred_region
      %s30 = ssub.s32 256, 256
      %31 = vsyncadd [#allocation4], %s30
      %s32 = sshll.u32 [#allocation5], 4
      %s33 = int_to_ptr.vmem [resolvable:$true] %s32
      %38 = dma.vmem_to_hbm [thread:$0]  %s33, 256, %s1, [#allocation4], 128, 128, 8
    $region13: #{tpu_custom_call.1} parent=1 // pred_fallthru
      _
    // Predicated region
    $region14: #{tpu_custom_call.1} parent=1 // pred_check
      _
    $region15: #{tpu_custom_call.1} parent=1 // pred_check_branch
      %40 = sbr.rel (0) target = $region17
    $region16: #{tpu_custom_call.1} parent=1 // pred_region
      %41 = dma.done [#allocation4], 256
    $region17: #{tpu_custom_call.1} parent=1 // pred_fallthru
      _
    %42 = vsyncpa [#allocation3], 1
    %43 = vsyncpa [#allocation4], 1

</llo_original>
